<compile_context>
chip_gen: v7x
topology: tpu7x:2x2x1
jax: 0.10.0
libtpu: 0.0.40
codegen_flags: <defaults>
</compile_context>

<pallas_src>
import functools
import math

import jax
import jax.numpy as jnp
from jax.experimental import pallas as pl
from jax.experimental.pallas import tpu as pltpu

_BN_EPS = 1e-5


# ---------------------------------------------------------------------------
# Per-generation VMEM budget
# ---------------------------------------------------------------------------
@functools.lru_cache(maxsize=None)
def _vmem_capacity_bytes():
    try:
        return int(pltpu.get_tpu_info().vmem_capacity_bytes)
    except Exception:
        return 64 * 1024 * 1024          # conservative default (v7x physical VMEM)


@functools.lru_cache(maxsize=None)
def _vmem_limit_bytes():
    # ~48 MiB on v7x (64 MiB physical), ~96 MiB on v5e/v6e (128 MiB physical).
    return int(min((_vmem_capacity_bytes() * 3) // 4, 100 * 1024 * 1024))


# ---------------------------------------------------------------------------
# In-kernel epilogue helpers
# ---------------------------------------------------------------------------
def _apply_activation(y, name):
    if name == "relu":
        return jnp.maximum(y, 0.0)
    if name == "leakyrelu":
        return jnp.where(y >= 0.0, y, 0.2 * y)
    if name == "sigmoid":
        return jax.nn.sigmoid(y)
    if name == "tanh":
        return jnp.tanh(y)
    if name == "none":
        return y
    raise ValueError(f"unknown activation {name!r}")


def _softmax_rows(y):
    # Row softmax; the divide goes to the EUP via approximate reciprocal.
    m = jnp.max(y, axis=-1, keepdims=True)
    e = jnp.exp(y - m)
    return e * pl.reciprocal(jnp.sum(e, axis=-1, keepdims=True), approx=True)


# ---------------------------------------------------------------------------
# PRIMARY PATH: whole autoencoder fused into one kernel (weights VMEM-resident)
# ---------------------------------------------------------------------------
def _fused_ae_kernel(*refs, layer_cfg, n_enc, compute_dtype):
    # refs = (x, w0, shift0, w1, shift1, ..., x_hat, latent)
    n_layers = len(layer_cfg)
    x_ref = refs[0]
    xhat_ref = refs[1 + 2 * n_layers]
    latent_ref = refs[2 + 2 * n_layers]

    h = x_ref[...]
    for l, (act, do_softmax) in enumerate(layer_cfg):
        w_ref = refs[1 + 2 * l]          # (K_l, N_l) — BN scale already folded in
        s_ref = refs[2 + 2 * l]          # (1, N_l) f32 shift (bias + BN)
        acc = jax.lax.dot_general(
            h, w_ref[...],
            dimension_numbers=(((1,), (0,)), ((), ())),
            preferred_element_type=jnp.float32)
        acc = acc + s_ref[...]
        acc = _apply_activation(acc, act)
        if do_softmax:
            acc = _softmax_rows(acc)
        if l == n_enc - 1:
            latent_ref[...] = acc.astype(latent_ref.dtype)
        if l == n_layers - 1:
            xhat_ref[...] = acc.astype(xhat_ref.dtype)
        else:
            h = acc.astype(compute_dtype)


def _fits_fused(x, params, n_enc):
    """Footprint check: all weights + activation tiles must fit the VMEM budget."""
    M, k0 = x.shape
    tm = M if M <= 512 else 256
    compute_dtype = params[0][0].dtype
    itemsize = jnp.dtype(compute_dtype).itemsize
    weight_bytes = sum(w.size * jnp.dtype(w.dtype).itemsize
                       + s.size * jnp.dtype(s.dtype).itemsize for (w, s) in params)
    max_width = max([k0] + [w.shape[1] for (w, _) in params])
    act_bytes = 2 * tm * k0 * itemsize                               # x tile, 2-buf
    out_bytes = 2 * tm * (params[-1][0].shape[1]
                          + params[n_enc - 1][0].shape[1]) * 4       # x_hat + latent
    work_bytes = 4 * tm * max_width * 4                              # in-flight acts
    total = weight_bytes + act_bytes + out_bytes + work_bytes
    return total <= int(0.8 * _vmem_limit_bytes())


def _fused_autoencoder_call(x, params, layer_cfg, n_enc, out_dtype):
    M, k0 = x.shape
    compute_dtype = params[0][0].dtype
    x = x.astype(compute_dtype)
    n_out = params[-1][0].shape[1]
    latent_dim = params[n_enc - 1][0].shape[1]

    tm = M if M <= 512 else 256                 # multiple of 8, or == M (full dim)
    grid = (pl.cdiv(M, tm),)

    in_specs = [pl.BlockSpec((tm, k0), lambda i: (i, 0))]
    operands = [x]
    for (w, shift) in params:
        kdim, ndim = w.shape
        # Constant block index -> fetched once, stays resident in VMEM.
        in_specs.append(pl.BlockSpec((kdim, ndim), lambda i: (0, 0)))
        in_specs.append(pl.BlockSpec((1, ndim), lambda i: (0, 0)))
        operands.append(w)
        operands.append(shift)

    kernel = functools.partial(_fused_ae_kernel, layer_cfg=layer_cfg,
                               n_enc=n_enc, compute_dtype=compute_dtype)

    x_hat, latent = pl.pallas_call(
        kernel,
        out_shape=(jax.ShapeDtypeStruct((M, n_out), out_dtype),
                   jax.ShapeDtypeStruct((M, latent_dim), out_dtype)),
        grid_spec=pltpu.PrefetchScalarGridSpec(
            num_scalar_prefetch=0,
            grid=grid,
            in_specs=in_specs,
            out_specs=[pl.BlockSpec((tm, n_out), lambda i: (i, 0)),
                       pl.BlockSpec((tm, latent_dim), lambda i: (i, 0))]),
        compiler_params=pltpu.CompilerParams(
            dimension_semantics=("parallel",),
            vmem_limit_bytes=_vmem_limit_bytes()),
    )(*operands)
    return x_hat, latent


# ---------------------------------------------------------------------------
# FALLBACK PATH: per-layer fused GEMM + epilogue, K-tiled f32 accumulator
# ---------------------------------------------------------------------------
def _layer_kernel(x_ref, w_ref, shift_ref, o_ref, acc_ref, *, activation, do_softmax):
    k = pl.program_id(2)

    @pl.when(k == 0)
    def _():
        acc_ref[...] = jnp.zeros_like(acc_ref)

    acc_ref[...] += jax.lax.dot_general(
        x_ref[...], w_ref[...],
        dimension_numbers=(((1,), (0,)), ((), ())),
        preferred_element_type=jnp.float32)

    @pl.when(k == pl.num_programs(2) - 1)
    def _():
        acc = acc_ref[...] + shift_ref[...]
        acc = _apply_activation(acc, activation)
        if do_softmax:
            acc = _softmax_rows(acc)
        o_ref[...] = acc.astype(o_ref.dtype)


def _per_layer_tiles(M, K, N, itemsize, out_itemsize, do_softmax, budget):
    tm = M if M <= 256 else 256
    tn = N if (do_softmax or N <= 512) else 512   # softmax needs the full row
    tk = K if K <= 512 else 512

    def footprint(tm_, tn_, tk_):
        # double-buffered x / w / shift tiles + double-buffered out tile + f32 acc
        return (2 * (tm_ * tk_ + tk_ * tn_ + tn_) * itemsize
                + 2 * tm_ * tn_ * out_itemsize
                + tm_ * tn_ * 4)

    while footprint(tm, tn, tk) > budget:
        if tk > 256 and tk != K:
            tk = max(tk // 2, 256)
        elif (not do_softmax) and tn > 256 and tn != N:
            tn = max(tn // 2, 256)
        elif tm > 64 and tm != M:
            tm = max(tm // 2, 64)
        else:
            break
    return tm, tn, tk


def fused_linear(x, w, shift, *, activation="none", do_softmax=False, out_dtype=None):
    """y = act(x @ w + shift), optional row softmax.  w is (K, N) pre-scaled."""
    M, K = x.shape
    K2, N = w.shape
    assert K == K2, "weight in_features must match activation features"
    out_dtype = out_dtype if out_dtype is not None else x.dtype

    itemsize = jnp.dtype(x.dtype).itemsize
    out_itemsize = jnp.dtype(out_dtype).itemsize
    budget = int(0.9 * _vmem_limit_bytes())
    tm, tn, tk = _per_layer_tiles(M, K, N, itemsize, out_itemsize, do_softmax, budget)

    # Zero-pad K so the reduction grid axis divides evenly (padding adds 0 to acc).
    k_pad = tk * pl.cdiv(K, tk)
    if k_pad != K:
        x = jnp.pad(x, ((0, 0), (0, k_pad - K)))
        w = jnp.pad(w, ((0, k_pad - K), (0, 0)))

    grid = (pl.cdiv(M, tm), pl.cdiv(N, tn), k_pad // tk)
    kernel = functools.partial(_layer_kernel, activation=activation,
                               do_softmax=do_softmax)

    return pl.pallas_call(
        kernel,
        out_shape=jax.ShapeDtypeStruct((M, N), out_dtype),
        grid_spec=pltpu.PrefetchScalarGridSpec(
            num_scalar_prefetch=0,
            grid=grid,
            in_specs=[
                pl.BlockSpec((tm, tk), lambda i, j, k: (i, k)),
                pl.BlockSpec((tk, tn), lambda i, j, k: (k, j)),
                pl.BlockSpec((1, tn), lambda i, j, k: (0, j)),
            ],
            out_specs=pl.BlockSpec((tm, tn), lambda i, j, k: (i, j)),
            scratch_shapes=[pltpu.VMEM((tm, tn), jnp.float32)]),
        compiler_params=pltpu.CompilerParams(
            dimension_semantics=("parallel", "parallel", "arbitrary"),
            vmem_limit_bytes=_vmem_limit_bytes()),
    )(x, w, shift)


# ---------------------------------------------------------------------------
# Full autoencoder forward
# ---------------------------------------------------------------------------
@functools.partial(jax.jit, static_argnames=("enc_cfg", "dec_cfg", "force_per_layer"))
def autoencoder_forward(x, enc_params, dec_params, enc_cfg, dec_cfg,
                        force_per_layer=False):
    out_dtype = x.dtype
    params = tuple(enc_params) + tuple(dec_params)
    cfg = tuple(enc_cfg) + tuple(dec_cfg)
    n_enc = len(enc_cfg)
    compute_dtype = params[0][0].dtype

    if (not force_per_layer) and _fits_fused(x, params, n_enc):
        return _fused_autoencoder_call(x, params, cfg, n_enc, out_dtype)

    # Per-layer fallback (weights too large to keep VMEM-resident).
    h = x.astype(compute_dtype)
    latent = None
    for l, ((w, shift), (act, sm)) in enumerate(zip(params, cfg)):
        is_last = (l == len(params) - 1)
        layer_out_dtype = out_dtype if (is_last or l == n_enc - 1) else compute_dtype
        h = fused_linear(h, w, shift, activation=act, do_softmax=sm,
                         out_dtype=layer_out_dtype)
        if l == n_enc - 1:
            latent = h
            h = h.astype(compute_dtype)
    return h, latent


# ---------------------------------------------------------------------------
# Parameter construction (mirrors the PyTorch module) + fold/transpose
# ---------------------------------------------------------------------------
def _linear_init(key, fan_in, fan_out):
    kw, kb = jax.random.split(key)
    bound = 1.0 / math.sqrt(fan_in)
    w = jax.random.uniform(kw, (fan_out, fan_in), minval=-bound, maxval=bound,
                           dtype=jnp.float32)
    b = jax.random.uniform(kb, (fan_out,), minval=-bound, maxval=bound,
                           dtype=jnp.float32)
    return w, b


def _bn_init(key, n):
    kg, kb, km, kv = jax.random.split(key, 4)
    gamma = 1.0 + 0.1 * jax.random.normal(kg, (n,), dtype=jnp.float32)
    beta = 0.1 * jax.random.normal(kb, (n,), dtype=jnp.float32)
    rmean = 0.1 * jax.random.normal(km, (n,), dtype=jnp.float32)
    rvar = jax.random.uniform(kv, (n,), minval=0.5, maxval=1.5, dtype=jnp.float32)
    return gamma, beta, rmean, rvar


def init_autoencoder(key, encoder_dim, *, activation="relu", batchnorm=True):
    dim = len(encoder_dim) - 1
    enc_raw = []
    for i in range(dim):
        key, kl, kn = jax.random.split(key, 3)
        w, b = _linear_init(kl, encoder_dim[i], encoder_dim[i + 1])
        use_bn = batchnorm and (i < dim - 1)
        bn = _bn_init(kn, encoder_dim[i + 1]) if use_bn else None
        act = activation if (i < dim - 1) else "none"
        enc_raw.append(dict(w=w, b=b, bn=bn, activation=act, softmax=(i == dim - 1)))
    decoder_dim = list(reversed(encoder_dim))
    dec_raw = []
    for i in range(dim):
        key, kl, kn = jax.random.split(key, 3)
        w, b = _linear_init(kl, decoder_dim[i], decoder_dim[i + 1])
        bn = _bn_init(kn, decoder_dim[i + 1]) if batchnorm else None
        dec_raw.append(dict(w=w, b=b, bn=bn, activation=activation, softmax=False))
    return enc_raw, dec_raw


def fold_params(raw_layers, *, param_dtype=jnp.float32):
    """Fold bias + eval-mode BN into (W', shift):  y = x @ W' + shift.

    W' = (W * scale[:, None]).T  (BN scale folded in, pre-transposed to (K, N)),
    shift = (b - running_mean) * scale + beta.
    """
    # TODO(synk): training-mode BatchNorm1d (per-batch statistics) is not
    # implemented; eval-mode running statistics are folded into the GEMM.
    params, cfg = [], []
    for l in raw_layers:
        w, b, bn = l["w"], l["b"], l["bn"]
        if bn is None:
            scale = jnp.ones_like(b)
            shift = b
        else:
            gamma, beta, rmean, rvar = bn
            scale = gamma * jax.lax.rsqrt(rvar + _BN_EPS)
            shift = (b - rmean) * scale + beta
        w_kn = (w * scale[:, None]).T.astype(param_dtype)      # (K, N), pre-scaled
        params.append((w_kn, shift.reshape(1, -1).astype(jnp.float32)))
        cfg.append((l["activation"], l["softmax"]))
    return tuple(params), tuple(cfg)


# ---------------------------------------------------------------------------
# Pure-JAX reference (from the UN-folded raw parameters, f32 HIGHEST precision)
# ---------------------------------------------------------------------------
def reference_forward(x, enc_raw, dec_raw):
    def act(y, name):
        if name == "relu":
            return jnp.maximum(y, 0.0)
        if name == "leakyrelu":
            return jnp.where(y >= 0.0, y, 0.2 * y)
        if name == "sigmoid":
            return jax.nn.sigmoid(y)
        if name == "tanh":
            return jnp.tanh(y)
        return y

    def run(h, layers):
        for l in layers:
            h = jnp.matmul(h, l["w"].T, precision=jax.lax.Precision.HIGHEST) + l["b"]
            if l["bn"] is not None:
                gamma, beta, rmean, rvar = l["bn"]
                h = (h - rmean) * jax.lax.rsqrt(rvar + _BN_EPS) * gamma + beta
            h = act(h, l["activation"])
            if l["softmax"]:
                h = jax.nn.softmax(h, axis=1)
        return h

    latent = run(x, enc_raw)
    x_hat = run(latent, dec_raw)
    return x_hat, latent


# ---------------------------------------------------------------------------
# Self-test
# ---------------------------------------------------------------------------
def _check_case(key, encoder_dim, num, *, param_dtype=jnp.float32,
                force_per_layer=False, atol=1e-2, rtol=1e-2):
    kx, kp = jax.random.split(key)
    x = jax.random.normal(kx, (num, encoder_dim[0]), dtype=jnp.float32)
    enc_raw, dec_raw = init_autoencoder(kp, encoder_dim,
                                        activation="relu", batchnorm=True)
    enc_params, enc_cfg = fold_params(enc_raw, param_dtype=param_dtype)
    dec_params, dec_cfg = fold_params(dec_raw, param_dtype=param_dtype)

    x_hat, latent = autoencoder_forward(x, enc_params, dec_params, enc_cfg, dec_cfg,
                                        force_per_layer=force_per_layer)
    x_hat = jax.block_until_ready(x_hat)
    latent = jax.block_until_ready(latent)

    ref_x_hat, ref_latent = reference_forward(x, enc_raw, dec_raw)
    assert latent.shape == (num, encoder_dim[-1])
    assert x_hat.shape == (num, encoder_dim[0])
    # Tolerance headroom covers the EUP approximate-reciprocal softmax epilogue
    # (and bf16 rounding for the bf16 case).
    assert jnp.allclose(latent, ref_latent, atol=atol, rtol=rtol), "latent mismatch"
    assert jnp.allclose(x_hat, ref_x_hat, atol=atol, rtol=rtol), "x_hat mismatch"


if __name__ == "__main__":
    root = jax.random.PRNGKey(0)
    k1, k2, k3 = jax.random.split(root, 3)

    # 1) Small module-consistent config — fully-fused single-kernel path, f32.
    _check_case(k1, encoder_dim=[32, 64, 16], num=16,
                param_dtype=jnp.float32, force_per_layer=False,
                atol=1e-2, rtol=1e-2)

    # 2) Larger config — exercise the per-layer fallback (K tiling + accumulator,
    #    N tiling with remainder, M remainder tiles, full-row softmax).
    _check_case(k2, encoder_dim=[640, 512, 256], num=384,
                param_dtype=jnp.float32, force_per_layer=True,
                atol=2e-2, rtol=2e-2)

    # 3) bf16 weights/activations on the fused path (f32 MXU accumulation).
    _check_case(k3, encoder_dim=[32, 64, 16], num=16,
                param_dtype=jnp.bfloat16, force_per_layer=False,
                atol=5e-2, rtol=5e-2)

    print("KERNEL_OK")
</pallas_src>

<mosaic_0001>
module attributes {stable_mosaic.version = 11 : i64} {
  func.func @_fused_ae_kernel(%arg0: i32, %arg1: memref<16x32xf32, #tpu.memory_space<vmem>>, %arg2: memref<32x64xf32, #tpu.memory_space<vmem>>, %arg3: memref<1x64xf32, #tpu.memory_space<vmem>>, %arg4: memref<64x16xf32, #tpu.memory_space<vmem>>, %arg5: memref<1x16xf32, #tpu.memory_space<vmem>>, %arg6: memref<16x64xf32, #tpu.memory_space<vmem>>, %arg7: memref<1x64xf32, #tpu.memory_space<vmem>>, %arg8: memref<64x32xf32, #tpu.memory_space<vmem>>, %arg9: memref<1x32xf32, #tpu.memory_space<vmem>>, %arg10: memref<16x32xf32, #tpu.memory_space<vmem>>, %arg11: memref<16x16xf32, #tpu.memory_space<vmem>>) attributes {dimension_semantics = [#tpu.dimension_semantics<parallel>], iteration_bounds = array<i64: 1>, scalar_prefetch = 0 : i64, scratch_operands = 0 : i64, tpu.core_type = #tpu.core_type<tc>, window_params = [{transform_indices = @transform_0, window_bounds = array<i64: 16, 32>}, {pipeline_mode = #tpu.pipeline_mode<synchronous>, transform_indices = @transform_1, window_bounds = array<i64: 32, 64>}, {pipeline_mode = #tpu.pipeline_mode<synchronous>, transform_indices = @transform_2, window_bounds = array<i64: 1, 64>}, {pipeline_mode = #tpu.pipeline_mode<synchronous>, transform_indices = @transform_3, window_bounds = array<i64: 64, 16>}, {pipeline_mode = #tpu.pipeline_mode<synchronous>, transform_indices = @transform_4, window_bounds = array<i64: 1, 16>}, {pipeline_mode = #tpu.pipeline_mode<synchronous>, transform_indices = @transform_5, window_bounds = array<i64: 16, 64>}, {pipeline_mode = #tpu.pipeline_mode<synchronous>, transform_indices = @transform_6, window_bounds = array<i64: 1, 64>}, {pipeline_mode = #tpu.pipeline_mode<synchronous>, transform_indices = @transform_7, window_bounds = array<i64: 64, 32>}, {pipeline_mode = #tpu.pipeline_mode<synchronous>, transform_indices = @transform_8, window_bounds = array<i64: 1, 32>}, {transform_indices = @transform_9, window_bounds = array<i64: 16, 32>}, {transform_indices = @transform_10, window_bounds = array<i64: 16, 16>}]} {
    %c0 = arith.constant 0 : index
    %c0_0 = arith.constant 0 : index
    %0 = vector.load %arg1[%c0, %c0_0] : memref<16x32xf32, #tpu.memory_space<vmem>>, vector<16x32xf32>
    %c0_1 = arith.constant 0 : index
    %c0_2 = arith.constant 0 : index
    %1 = vector.load %arg2[%c0_1, %c0_2] : memref<32x64xf32, #tpu.memory_space<vmem>>, vector<32x64xf32>
    %cst = arith.constant dense<0.000000e+00> : vector<16x64xf32>
    %2 = tpu.matmul %0, %1, %cst {dimension_numbers = #tpu.dot_dimension_numbers<[1], [0], [0], [1], [0, 0, 1, 1], [], []>} : vector<16x32xf32>, vector<32x64xf32>, vector<16x64xf32> -> vector<16x64xf32>
    %c0_3 = arith.constant 0 : index
    %c0_4 = arith.constant 0 : index
    %3 = vector.load %arg3[%c0_3, %c0_4] : memref<1x64xf32, #tpu.memory_space<vmem>>, vector<1x64xf32>
    %4 = vector.broadcast %3 : vector<1x64xf32> to vector<16x64xf32>
    %5 = arith.addf %2, %4 : vector<16x64xf32>
    %cst_5 = arith.constant 0.000000e+00 : f32
    %6 = vector.broadcast %cst_5 : f32 to vector<16x64xf32>
    %7 = arith.maximumf %5, %6 : vector<16x64xf32>
    %c0_6 = arith.constant 0 : index
    %c0_7 = arith.constant 0 : index
    %8 = vector.load %arg4[%c0_6, %c0_7] : memref<64x16xf32, #tpu.memory_space<vmem>>, vector<64x16xf32>
    %cst_8 = arith.constant dense<0.000000e+00> : vector<16x16xf32>
    %9 = tpu.matmul %7, %8, %cst_8 {dimension_numbers = #tpu.dot_dimension_numbers<[1], [0], [0], [1], [0, 0, 1, 1], [], []>} : vector<16x64xf32>, vector<64x16xf32>, vector<16x16xf32> -> vector<16x16xf32>
    %c0_9 = arith.constant 0 : index
    %c0_10 = arith.constant 0 : index
    %10 = vector.load %arg5[%c0_9, %c0_10] : memref<1x16xf32, #tpu.memory_space<vmem>>, vector<1x16xf32>
    %11 = vector.broadcast %10 : vector<1x16xf32> to vector<16x16xf32>
    %12 = arith.addf %9, %11 : vector<16x16xf32>
    %cst_11 = arith.constant dense<0xFF800000> : vector<16xf32>
    %13 = vector.multi_reduction <maximumf>, %12, %cst_11 [1] : vector<16x16xf32> to vector<16xf32>
    %14 = vector.shape_cast %13 : vector<16xf32> to vector<16x1xf32>
    %15 = vector.broadcast %14 : vector<16x1xf32> to vector<16x16xf32>
    %16 = arith.subf %12, %15 : vector<16x16xf32>
    %17 = math.exp %16 : vector<16x16xf32>
    %cst_12 = arith.constant dense<0.000000e+00> : vector<16xf32>
    %18 = vector.multi_reduction <add>, %17, %cst_12 [1] : vector<16x16xf32> to vector<16xf32>
    %19 = vector.shape_cast %18 : vector<16xf32> to vector<16x1xf32>
    %20 = tpu.reciprocal %19 {approx = true} : vector<16x1xf32> -> vector<16x1xf32>
    %21 = vector.broadcast %20 : vector<16x1xf32> to vector<16x16xf32>
    %22 = arith.mulf %17, %21 : vector<16x16xf32>
    %c0_13 = arith.constant 0 : index
    %c0_14 = arith.constant 0 : index
    %23 = vector.load %arg11[%c0_13, %c0_14] : memref<16x16xf32, #tpu.memory_space<vmem>>, vector<16x16xf32>
    tpu.vector_store %arg11[%c0_13, %c0_14], %22 {strides = array<i32>} : memref<16x16xf32, #tpu.memory_space<vmem>>, vector<16x16xf32>,
    %c0_15 = arith.constant 0 : index
    %c0_16 = arith.constant 0 : index
    %24 = vector.load %arg6[%c0_15, %c0_16] : memref<16x64xf32, #tpu.memory_space<vmem>>, vector<16x64xf32>
    %cst_17 = arith.constant dense<0.000000e+00> : vector<16x64xf32>
    %25 = tpu.matmul %22, %24, %cst_17 {dimension_numbers = #tpu.dot_dimension_numbers<[1], [0], [0], [1], [0, 0, 1, 1], [], []>} : vector<16x16xf32>, vector<16x64xf32>, vector<16x64xf32> -> vector<16x64xf32>
    %c0_18 = arith.constant 0 : index
    %c0_19 = arith.constant 0 : index
    %26 = vector.load %arg7[%c0_18, %c0_19] : memref<1x64xf32, #tpu.memory_space<vmem>>, vector<1x64xf32>
    %27 = vector.broadcast %26 : vector<1x64xf32> to vector<16x64xf32>
    %28 = arith.addf %25, %27 : vector<16x64xf32>
    %cst_20 = arith.constant 0.000000e+00 : f32
    %29 = vector.broadcast %cst_20 : f32 to vector<16x64xf32>
    %30 = arith.maximumf %28, %29 : vector<16x64xf32>
    %c0_21 = arith.constant 0 : index
    %c0_22 = arith.constant 0 : index
    %31 = vector.load %arg8[%c0_21, %c0_22] : memref<64x32xf32, #tpu.memory_space<vmem>>, vector<64x32xf32>
    %cst_23 = arith.constant dense<0.000000e+00> : vector<16x32xf32>
    %32 = tpu.matmul %30, %31, %cst_23 {dimension_numbers = #tpu.dot_dimension_numbers<[1], [0], [0], [1], [0, 0, 1, 1], [], []>} : vector<16x64xf32>, vector<64x32xf32>, vector<16x32xf32> -> vector<16x32xf32>
    %c0_24 = arith.constant 0 : index
    %c0_25 = arith.constant 0 : index
    %33 = vector.load %arg9[%c0_24, %c0_25] : memref<1x32xf32, #tpu.memory_space<vmem>>, vector<1x32xf32>
    %34 = vector.broadcast %33 : vector<1x32xf32> to vector<16x32xf32>
    %35 = arith.addf %32, %34 : vector<16x32xf32>
    %cst_26 = arith.constant 0.000000e+00 : f32
    %36 = vector.broadcast %cst_26 : f32 to vector<16x32xf32>
    %37 = arith.maximumf %35, %36 : vector<16x32xf32>
    %c0_27 = arith.constant 0 : index
    %c0_28 = arith.constant 0 : index
    %38 = vector.load %arg10[%c0_27, %c0_28] : memref<16x32xf32, #tpu.memory_space<vmem>>, vector<16x32xf32>
    tpu.vector_store %arg10[%c0_27, %c0_28], %37 {strides = array<i32>} : memref<16x32xf32, #tpu.memory_space<vmem>>, vector<16x32xf32>,
    return
  }
  func.func @transform_0(%arg0: i32) -> (i32, i32) {
    %c0_i32 = arith.constant 0 : i32
    %c0_i32_0 = arith.constant 0 : i32
    return %arg0, %c0_i32 : i32, i32
  }
  func.func @transform_1(%arg0: i32) -> (i32, i32) {
    %c0_i32 = arith.constant 0 : i32
    %c0_i32_0 = arith.constant 0 : i32
    %c0_i32_1 = arith.constant 0 : i32
    return %c0_i32, %c0_i32_0 : i32, i32
  }
  func.func @transform_2(%arg0: i32) -> (i32, i32) {
    %c0_i32 = arith.constant 0 : i32
    %c0_i32_0 = arith.constant 0 : i32
    %c0_i32_1 = arith.constant 0 : i32
    return %c0_i32, %c0_i32_0 : i32, i32
  }
  func.func @transform_3(%arg0: i32) -> (i32, i32) {
    %c0_i32 = arith.constant 0 : i32
    %c0_i32_0 = arith.constant 0 : i32
    %c0_i32_1 = arith.constant 0 : i32
    return %c0_i32, %c0_i32_0 : i32, i32
  }
  func.func @transform_4(%arg0: i32) -> (i32, i32) {
    %c0_i32 = arith.constant 0 : i32
    %c0_i32_0 = arith.constant 0 : i32
    %c0_i32_1 = arith.constant 0 : i32
    return %c0_i32, %c0_i32_0 : i32, i32
  }
  func.func @transform_5(%arg0: i32) -> (i32, i32) {
    %c0_i32 = arith.constant 0 : i32
    %c0_i32_0 = arith.constant 0 : i32
    %c0_i32_1 = arith.constant 0 : i32
    return %c0_i32, %c0_i32_0 : i32, i32
  }
  func.func @transform_6(%arg0: i32) -> (i32, i32) {
    %c0_i32 = arith.constant 0 : i32
    %c0_i32_0 = arith.constant 0 : i32
    %c0_i32_1 = arith.constant 0 : i32
    return %c0_i32, %c0_i32_0 : i32, i32
  }
  func.func @transform_7(%arg0: i32) -> (i32, i32) {
    %c0_i32 = arith.constant 0 : i32
    %c0_i32_0 = arith.constant 0 : i32
    %c0_i32_1 = arith.constant 0 : i32
    return %c0_i32, %c0_i32_0 : i32, i32
  }
  func.func @transform_8(%arg0: i32) -> (i32, i32) {
    %c0_i32 = arith.constant 0 : i32
    %c0_i32_0 = arith.constant 0 : i32
    %c0_i32_1 = arith.constant 0 : i32
    return %c0_i32, %c0_i32_0 : i32, i32
  }
  func.func @transform_9(%arg0: i32) -> (i32, i32) {
    %c0_i32 = arith.constant 0 : i32
    %c0_i32_0 = arith.constant 0 : i32
    return %arg0, %c0_i32 : i32, i32
  }
  func.func @transform_10(%arg0: i32) -> (i32, i32) {
    %c0_i32 = arith.constant 0 : i32
    %c0_i32_0 = arith.constant 0 : i32
    return %arg0, %c0_i32 : i32, i32
  }
}

</mosaic_0001>

<llo_original>
// kernel: autoencoder_forward.1
$region0: #{autoencoder_forward.1}
  #allocation0 [shape = 'u32[]', space=smem, size = 0x4, offset = 0x4, fixed_abs, tag = 'smem constant byte address 0x4 - core index']
  #allocation1 [shape = 'u32[144,128]{1,0:T(1,128)}', space=vmem, size = 0x12000, scoped, tag = 'internal scratch']
  %s0 = inlined_call_operand.vmem [shape: f32[16,32], index: 0, kind: input, shape index: {}]
  %s1 = inlined_call_operand.vmem [shape: f32[32,64], index: 1, kind: input, shape index: {}]
  %s2 = inlined_call_operand.vmem [shape: f32[1,64], index: 2, kind: input, shape index: {}]
  %s3 = inlined_call_operand.vmem [shape: f32[64,16], index: 3, kind: input, shape index: {}]
  %s4 = inlined_call_operand.vmem [shape: f32[1,16], index: 4, kind: input, shape index: {}]
  %s5 = inlined_call_operand.vmem [shape: f32[16,64], index: 5, kind: input, shape index: {}]
  %s6 = inlined_call_operand.vmem [shape: f32[1,64], index: 6, kind: input, shape index: {}]
  %s7 = inlined_call_operand.vmem [shape: f32[64,32], index: 7, kind: input, shape index: {}]
  %s8 = inlined_call_operand.vmem [shape: f32[1,32], index: 8, kind: input, shape index: {}]
  %s9 = inlined_call_operand.hbm [shape: f32[16,32], index: 9, kind: output, shape index: {0}]
  %s10 = inlined_call_operand.hbm [shape: f32[16,16], index: 10, kind: output, shape index: {1}]
  %11 = xla_tuple %s9, %s10
  %s12 = sld [smem:[#allocation0]]
  $region54: #{autoencoder_forward.1} parent=0
    _
  %s14 = ssub.s32 1, %s12
  %s15 = scalar_select 0, %s14, %s12
  $region1: #{autoencoder_forward.1} parent=0
    #allocation2 [shape = 'u8[8192]{0}', space=vmem, size = 0x2000, scoped, tag = 'output window, operand 0, single buffered']
    #allocation3 [shape = 's32[1]{0}', space=sflag, size = 0x4, scoped, tag = 'scoped memory for autoencoder_forward.1']
    #allocation4 [shape = 'u8[8192]{0}', space=vmem, size = 0x2000, scoped, tag = 'output window, operand 1, single buffered']
    #allocation5 [shape = 's32[1]{0}', space=sflag, size = 0x4, scoped, tag = 'scoped memory for autoencoder_forward.1']
    %16 = vsyncpa [#allocation3], 0
    %17 = vsyncpa [#allocation5], 0
    // Predicated region
    $region2: #{autoencoder_forward.1} parent=1 // pred_check
      _
    $region3: #{autoencoder_forward.1} parent=1 // pred_check_branch
      %19 = sbr.rel (0) target = $region5
    $region4: #{autoencoder_forward.1} parent=1 // pred_region
      _
    $region5: #{autoencoder_forward.1} parent=1 // pred_fallthru
      _
    // Predicated region
    $region6: #{autoencoder_forward.1} parent=1 // pred_check
      _
    $region7: #{autoencoder_forward.1} parent=1 // pred_check_branch
      %21 = sbr.rel (0) target = $region9
    $region8: #{autoencoder_forward.1} parent=1 // pred_region
      _
    $region9: #{autoencoder_forward.1} parent=1 // pred_fallthru
      _
    // Predicated region
    $region10: #{autoencoder_forward.1} parent=1 // pred_check
      _
    $region11: #{autoencoder_forward.1} parent=1 // pred_check_branch
      %23 = sbr.rel (0) target = $region13
    $region12: #{autoencoder_forward.1} parent=1 // pred_region
      _
    $region13: #{autoencoder_forward.1} parent=1 // pred_fallthru
      _
    // Predicated region
    $region14: #{autoencoder_forward.1} parent=1 // pred_check
      _
    $region15: #{autoencoder_forward.1} parent=1 // pred_check_branch
      %25 = sbr.rel (0) target = $region17
    $region16: #{autoencoder_forward.1} parent=1 // pred_region
      _
    $region17: #{autoencoder_forward.1} parent=1 // pred_fallthru
      _
    // Predicated region
    $region18: #{autoencoder_forward.1} parent=1 // pred_check
      _
    $region19: #{autoencoder_forward.1} parent=1 // pred_check_branch
      %27 = sbr.rel (0) target = $region21
    $region20: #{autoencoder_forward.1} parent=1 // pred_region
      _
    $region21: #{autoencoder_forward.1} parent=1 // pred_fallthru
      _
    // Predicated region
    $region22: #{autoencoder_forward.1} parent=1 // pred_check
      _
    $region23: #{autoencoder_forward.1} parent=1 // pred_check_branch
      %29 = sbr.rel (0) target = $region25
    $region24: #{autoencoder_forward.1} parent=1 // pred_region
      _
    $region25: #{autoencoder_forward.1} parent=1 // pred_fallthru
      _
    // Predicated region
    $region26: #{autoencoder_forward.1} parent=1 // pred_check
      _
    $region27: #{autoencoder_forward.1} parent=1 // pred_check_branch
      %31 = sbr.rel (0) target = $region29
    $region28: #{autoencoder_forward.1} parent=1 // pred_region
      _
    $region29: #{autoencoder_forward.1} parent=1 // pred_fallthru
      _
    // Predicated region
    $region30: #{autoencoder_forward.1} parent=1 // pred_check
      _
    $region31: #{autoencoder_forward.1} parent=1 // pred_check_branch
      %33 = sbr.rel (0) target = $region33
    $region32: #{autoencoder_forward.1} parent=1 // pred_region
      _
    $region33: #{autoencoder_forward.1} parent=1 // pred_fallthru
      _
    // Predicated region
    $region34: #{autoencoder_forward.1} parent=1 // pred_check
      _
    $region35: #{autoencoder_forward.1} parent=1 // pred_check_branch
      %35 = sbr.rel (0) target = $region37
    $region36: #{autoencoder_forward.1} parent=1 // pred_region
      _
    $region37: #{autoencoder_forward.1} parent=1 // pred_fallthru
      _
    %v36 = vld [vmem:[%s0] sm:$0xff]
    %v37 = vld [vmem:[%s0 + $0x8] sm:$0xff]
    %v38 = vld [vmem:[%s1] sm:$0xff]
    %v39 = vld [vmem:[%s1 + $0x8] sm:$0xff]
    %v40 = vld [vmem:[%s1 + $0x10] sm:$0xff]
    %v41 = vld [vmem:[%s1 + $0x18] sm:$0xff]
    %v42 = vld [vmem:[%s2] sm:$0x1]
    %v44 = vlaneseq
    %v45 = vshrl.u32 %v44, 7
    %v46 = vsub.s32 0, %v45
    %v47 = vrot.slane %v42, %v46
    %vm49 = vcmask 261120
    %v51 = vsel %vm49, %v36, 0
    %v54 = vsel %vm49, %v37, 0
    %56 = vmatprep.subr.mxu0 0.0
    %57 = vmatpush1.msra.mxu0 %v38
    %58 = vmatprep.subr.mxu0 0.0
    %59 = vmatpush1.msra.mxu0 %v39
    %60 = vmatprep.subr.mxu0 0.0
    %61 = vmatpush1.msra.mxu0 %v40
    %62 = vmatprep.subr.mxu0 0.0
    %63 = vmatpush1.msra.mxu0 %v41
    %64 = vmatprep.subr.mxu0 0.0
    %65 = vmatpush1.msra.mxu0 0.0
    %66 = vmatprep.subr.mxu0 0.0
    %67 = vmatpush1.msra.mxu0 0.0
    %68 = vmatprep.subr.mxu0 0.0
    %69 = vmatpush1.msra.mxu0 0.0
    %70 = vmatprep.subr.mxu0 0.0
    %71 = vmatpush1.msra.mxu0 0.0
    %72 = vmatprep.subr.mxu0 0.0
    %73 = vmatpush1.msra.mxu0 0.0
    %74 = vmatprep.subr.mxu0 0.0
    %75 = vmatpush1.msra.mxu0 0.0
    %76 = vmatprep.subr.mxu0 0.0
    %77 = vmatpush1.msra.mxu0 0.0
    %78 = vmatprep.subr.mxu0 0.0
    %79 = vmatpush1.msra.mxu0 0.0
    %80 = vmatprep.subr.mxu0 0.0
    %81 = vmatpush1.msra.mxu0 0.0
    %82 = vmatprep.subr.mxu0 0.0
    %83 = vmatpush1.msra.mxu0 0.0
    %84 = vmatprep.subr.mxu0 0.0
    %85 = vmatpush1.msra.mxu0 0.0
    %86 = vmatprep.subr.mxu0 0.0
    %87 = vmatpush1.msra.mxu0 0.0
    %88 = vmatprep.subr.mxu0 0.0
    %89 = vmatpush1.msra.mxu0 0.0
    %90 = vmatprep.subr.mxu0 0.0
    %91 = vmatpush1.msra.mxu0 0.0
    %92 = vmatprep.subr.mxu0 0.0
    %93 = vmatpush1.msra.mxu0 0.0
    %94 = vmatprep.subr.mxu0 0.0
    %95 = vmatpush1.msra.mxu0 0.0
    %96 = vmatprep.subr.mxu0 0.0
    %97 = vmatpush1.msra.mxu0 0.0
    %98 = vmatprep.subr.mxu0 0.0
    %99 = vmatpush1.msra.mxu0 0.0
    %100 = vmatprep.subr.mxu0 0.0
    %101 = vmatpush1.msra.mxu0 0.0
    %102 = vmatprep.subr.mxu0 0.0
    %103 = vmatpush1.msra.mxu0 0.0
    %104 = vmatprep.subr.mxu0 0.0
    %105 = vmatpush1.msra.mxu0 0.0
    %106 = vmatprep.subr.mxu0 0.0
    %107 = vmatpush1.msra.mxu0 0.0
    %108 = vmatprep.subr.mxu0 0.0
    %109 = vmatpush1.msra.mxu0 0.0
    %110 = vmatprep.subr.mxu0 0.0
    %111 = vmatpush1.msra.mxu0 0.0
    %112 = vmatprep.subr.mxu0 0.0
    %113 = vmatpush1.msra.mxu0 0.0
    %114 = vmatprep.subr.mxu0 0.0
    %115 = vmatpush1.msra.mxu0 0.0
    %116 = vmatprep.subr.mxu0 0.0
    %117 = vmatpush1.msra.mxu0 0.0
    %118 = vmatprep.subr.mxu0 0.0
    %119 = vmatpush1.msra.mxu0 0.0
    %120 = vmatprep.mubr.f32.mxu0 0.0
    %121 = vmatmul.mubr.f32.gmra.mrb[0].mxu0 %v51
    %v122 = vpop.f32.mrb[0].mxu0
    %v123 = vadd.f32 %v47, %v122
    %v124 = vpop.f32.mrb[0].mxu0
    %125 = vmatprep.mubr.f32.mxu0 0.0
    %126 = vmatmul.mubr.f32.gmra.mrb[0].mxu0 %v54
    %v127 = vpop.f32.mrb[0].mxu0
    %v128 = vadd.f32 %v47, %v127
    %v129 = vpop.f32.mrb[0].mxu0
    %130 = vdwg.mxu0
    %v131 = vmax.f32 %v123, 0.0
    %v132 = vmax.f32 %v128, 0.0
    %v133 = vld [vmem:[%s3] sm:$0xff]
    %v134 = vld [vmem:[%s3 + $0x8] sm:$0xff]
    %v135 = vld [vmem:[%s3 + $0x10] sm:$0xff]
    %v136 = vld [vmem:[%s3 + $0x18] sm:$0xff]
    %v137 = vld [vmem:[%s3 + $0x20] sm:$0xff]
    %v138 = vld [vmem:[%s3 + $0x28] sm:$0xff]
    %v139 = vld [vmem:[%s3 + $0x30] sm:$0xff]
    %v140 = vld [vmem:[%s3 + $0x38] sm:$0xff]
    %v141 = vld [vmem:[%s4] sm:$0x1]
    %v143 = vlaneseq
    %v144 = vshrl.u32 %v143, 7
    %v145 = vsub.s32 0, %v144
    %v146 = vrot.slane %v141, %v145
    %vm148 = vcmask 523264
    %v150 = vsel %vm148, %v131, 0
    %v153 = vsel %vm148, %v132, 0
    %155 = vmatprep.subr.mxu0 0.0
    %156 = vmatpush1.msra.mxu0 %v133
    %157 = vmatprep.subr.mxu0 0.0
    %158 = vmatpush1.msra.mxu0 %v134
    %159 = vmatprep.subr.mxu0 0.0
    %160 = vmatpush1.msra.mxu0 %v135
    %161 = vmatprep.subr.mxu0 0.0
    %162 = vmatpush1.msra.mxu0 %v136
    %163 = vmatprep.subr.mxu0 0.0
    %164 = vmatpush1.msra.mxu0 %v137
    %165 = vmatprep.subr.mxu0 0.0
    %166 = vmatpush1.msra.mxu0 %v138
    %167 = vmatprep.subr.mxu0 0.0
    %168 = vmatpush1.msra.mxu0 %v139
    %169 = vmatprep.subr.mxu0 0.0
    %170 = vmatpush1.msra.mxu0 %v140
    %171 = vmatprep.subr.mxu0 0.0
    %172 = vmatpush1.msra.mxu0 0.0
    %173 = vmatprep.subr.mxu0 0.0
    %174 = vmatpush1.msra.mxu0 0.0
    %175 = vmatprep.subr.mxu0 0.0
    %176 = vmatpush1.msra.mxu0 0.0
    %177 = vmatprep.subr.mxu0 0.0
    %178 = vmatpush1.msra.mxu0 0.0
    %179 = vmatprep.subr.mxu0 0.0
    %180 = vmatpush1.msra.mxu0 0.0
    %181 = vmatprep.subr.mxu0 0.0
    %182 = vmatpush1.msra.mxu0 0.0
    %183 = vmatprep.subr.mxu0 0.0
    %184 = vmatpush1.msra.mxu0 0.0
    %185 = vmatprep.subr.mxu0 0.0
    %186 = vmatpush1.msra.mxu0 0.0
    %187 = vmatprep.subr.mxu0 0.0
    %188 = vmatpush1.msra.mxu0 0.0
    %189 = vmatprep.subr.mxu0 0.0
    %190 = vmatpush1.msra.mxu0 0.0
    %191 = vmatprep.subr.mxu0 0.0
    %192 = vmatpush1.msra.mxu0 0.0
    %193 = vmatprep.subr.mxu0 0.0
    %194 = vmatpush1.msra.mxu0 0.0
    %195 = vmatprep.subr.mxu0 0.0
    %196 = vmatpush1.msra.mxu0 0.0
    %197 = vmatprep.subr.mxu0 0.0
    %198 = vmatpush1.msra.mxu0 0.0
    %199 = vmatprep.subr.mxu0 0.0
    %200 = vmatpush1.msra.mxu0 0.0
    %201 = vmatprep.subr.mxu0 0.0
    %202 = vmatpush1.msra.mxu0 0.0
    %203 = vmatprep.subr.mxu0 0.0
    %204 = vmatpush1.msra.mxu0 0.0
    %205 = vmatprep.subr.mxu0 0.0
    %206 = vmatpush1.msra.mxu0 0.0
    %207 = vmatprep.subr.mxu0 0.0
    %208 = vmatpush1.msra.mxu0 0.0
    %209 = vmatprep.subr.mxu0 0.0
    %210 = vmatpush1.msra.mxu0 0.0
    %211 = vmatprep.subr.mxu0 0.0
    %212 = vmatpush1.msra.mxu0 0.0
    %213 = vmatprep.subr.mxu0 0.0
    %214 = vmatpush1.msra.mxu0 0.0
    %215 = vmatprep.subr.mxu0 0.0
    %216 = vmatpush1.msra.mxu0 0.0
    %217 = vmatprep.subr.mxu0 0.0
    %218 = vmatpush1.msra.mxu0 0.0
    %219 = vmatprep.mubr.f32.mxu0 0.0
    %220 = vmatmul.mubr.f32.gmra.mrb[0].mxu0 %v150
    %v221 = vpop.f32.mrb[0].mxu0
    %v222 = vadd.f32 %v146, %v221
    %v223 = vpop.f32.mrb[0].mxu0
    %224 = vmatprep.mubr.f32.mxu0 0.0
    %225 = vmatmul.mubr.f32.gmra.mrb[0].mxu0 %v153
    %v226 = vpop.f32.mrb[0].mxu0
    %v227 = vadd.f32 %v146, %v226
    %v228 = vpop.f32.mrb[0].mxu0
    %229 = vdwg.mxu0
    %vm230 = vcmask 130048
    %v231 = vsel %vm230, %v222, -inf
    %232 = vmax.xlane.f32.xlu0 %v231
    %v233 = vpop.xlane.xlu0 %232
    %v234 = vsel %vm230, %v227, -inf
    %235 = vmax.xlane.f32.xlu0 %v234
    %v236 = vpop.xlane.xlu0 %235
    %v237 = vsub.f32 %v222, %v233
    %v238 = vsub.f32 %v227, %v236
    %v239 = vmul.f32 %v237, 1.442695
    %v240 = vpow.pop %v239
    %v241 = vmul.f32 %v238, 1.442695
    %v242 = vpow.pop %v241
    %v243 = vsel %vm230, %v240, 0.0
    %244 = vadd.xlane.f32.xlu0 %v243
    %v245 = vpop.xlane.xlu0 %244
    %v246 = vsel %vm230, %v242, 0.0
    %247 = vadd.xlane.f32.xlu0 %v246
    %v248 = vpop.xlane.xlu0 %247
    %v249 = vrcp.pop %v245
    %v250 = vrcp.pop %v248
    %v251 = vmul.f32 %v240, %v249
    %v252 = vmul.f32 %v242, %v250
    %253 = vst.msk [vmem:[#allocation4] sm:$0xff] %vm230, %v251
    %254 = vst.msk [vmem:[#allocation4 + $0x8] sm:$0xff] %vm230, %v252
    %v255 = vld [vmem:[%s5] sm:$0xff]
    %v256 = vld [vmem:[%s5 + $0x8] sm:$0xff]
    %v257 = vld [vmem:[%s6] sm:$0x1]
    %v259 = vlaneseq
    %v260 = vshrl.u32 %v259, 7
    %v261 = vsub.s32 0, %v260
    %v262 = vrot.slane %v257, %v261
    %v265 = vsel %vm230, %v251, 0
    %v268 = vsel %vm230, %v252, 0
    %270 = vmatprep.subr.mxu0 0.0
    %271 = vmatpush1.msra.mxu0 %v255
    %272 = vmatprep.subr.mxu0 0.0
    %273 = vmatpush1.msra.mxu0 %v256
    %274 = vmatprep.subr.mxu0 0.0
    %275 = vmatpush1.msra.mxu0 0.0
    %276 = vmatprep.subr.mxu0 0.0
    %277 = vmatpush1.msra.mxu0 0.0
    %278 = vmatprep.subr.mxu0 0.0
    %279 = vmatpush1.msra.mxu0 0.0
    %280 = vmatprep.subr.mxu0 0.0
    %281 = vmatpush1.msra.mxu0 0.0
    %282 = vmatprep.subr.mxu0 0.0
    %283 = vmatpush1.msra.mxu0 0.0
    %284 = vmatprep.subr.mxu0 0.0
    %285 = vmatpush1.msra.mxu0 0.0
    %286 = vmatprep.subr.mxu0 0.0
    %287 = vmatpush1.msra.mxu0 0.0
    %288 = vmatprep.subr.mxu0 0.0
    %289 = vmatpush1.msra.mxu0 0.0
    %290 = vmatprep.subr.mxu0 0.0
    %291 = vmatpush1.msra.mxu0 0.0
    %292 = vmatprep.subr.mxu0 0.0
    %293 = vmatpush1.msra.mxu0 0.0
    %294 = vmatprep.subr.mxu0 0.0
    %295 = vmatpush1.msra.mxu0 0.0
    %296 = vmatprep.subr.mxu0 0.0
    %297 = vmatpush1.msra.mxu0 0.0
    %298 = vmatprep.subr.mxu0 0.0
    %299 = vmatpush1.msra.mxu0 0.0
    %300 = vmatprep.subr.mxu0 0.0
    %301 = vmatpush1.msra.mxu0 0.0
    %302 = vmatprep.subr.mxu0 0.0
    %303 = vmatpush1.msra.mxu0 0.0
    %304 = vmatprep.subr.mxu0 0.0
    %305 = vmatpush1.msra.mxu0 0.0
    %306 = vmatprep.subr.mxu0 0.0
    %307 = vmatpush1.msra.mxu0 0.0
    %308 = vmatprep.subr.mxu0 0.0
    %309 = vmatpush1.msra.mxu0 0.0
    %310 = vmatprep.subr.mxu0 0.0
    %311 = vmatpush1.msra.mxu0 0.0
    %312 = vmatprep.subr.mxu0 0.0
    %313 = vmatpush1.msra.mxu0 0.0
    %314 = vmatprep.subr.mxu0 0.0
    %315 = vmatpush1.msra.mxu0 0.0
    %316 = vmatprep.subr.mxu0 0.0
    %317 = vmatpush1.msra.mxu0 0.0
    %318 = vmatprep.subr.mxu0 0.0
    %319 = vmatpush1.msra.mxu0 0.0
    %320 = vmatprep.subr.mxu0 0.0
    %321 = vmatpush1.msra.mxu0 0.0
    %322 = vmatprep.subr.mxu0 0.0
    %323 = vmatpush1.msra.mxu0 0.0
    %324 = vmatprep.subr.mxu0 0.0
    %325 = vmatpush1.msra.mxu0 0.0
    %326 = vmatprep.subr.mxu0 0.0
    %327 = vmatpush1.msra.mxu0 0.0
    %328 = vmatprep.subr.mxu0 0.0
    %329 = vmatpush1.msra.mxu0 0.0
    %330 = vmatprep.subr.mxu0 0.0
    %331 = vmatpush1.msra.mxu0 0.0
    %332 = vmatprep.subr.mxu0 0.0
    %333 = vmatpush1.msra.mxu0 0.0
    %334 = vmatprep.mubr.f32.mxu0 0.0
    %335 = vmatmul.mubr.f32.gmra.mrb[0].mxu0 %v265
    %v336 = vpop.f32.mrb[0].mxu0
    %v337 = vadd.f32 %v262, %v336
    %v338 = vpop.f32.mrb[0].mxu0
    %339 = vmatprep.mubr.f32.mxu0 0.0
    %340 = vmatmul.mubr.f32.gmra.mrb[0].mxu0 %v268
    %v341 = vpop.f32.mrb[0].mxu0
    %v342 = vadd.f32 %v262, %v341
    %v343 = vpop.f32.mrb[0].mxu0
    %344 = vdwg.mxu0
    %v345 = vmax.f32 %v337, 0.0
    %v346 = vmax.f32 %v342, 0.0
    %v347 = vld [vmem:[%s7] sm:$0xff]
    %v348 = vld [vmem:[%s7 + $0x8] sm:$0xff]
    %v349 = vld [vmem:[%s7 + $0x10] sm:$0xff]
    %v350 = vld [vmem:[%s7 + $0x18] sm:$0xff]
    %v351 = vld [vmem:[%s7 + $0x20] sm:$0xff]
    %v352 = vld [vmem:[%s7 + $0x28] sm:$0xff]
    %v353 = vld [vmem:[%s7 + $0x30] sm:$0xff]
    %v354 = vld [vmem:[%s7 + $0x38] sm:$0xff]
    %v355 = vld [vmem:[%s8] sm:$0x1]
    %v357 = vlaneseq
    %v358 = vshrl.u32 %v357, 7
    %v359 = vsub.s32 0, %v358
    %v360 = vrot.slane %v355, %v359
    %v363 = vsel %vm148, %v345, 0
    %v366 = vsel %vm148, %v346, 0
    %368 = vmatprep.subr.mxu0 0.0
    %369 = vmatpush1.msra.mxu0 %v347
    %370 = vmatprep.subr.mxu0 0.0
    %371 = vmatpush1.msra.mxu0 %v348
    %372 = vmatprep.subr.mxu0 0.0
    %373 = vmatpush1.msra.mxu0 %v349
    %374 = vmatprep.subr.mxu0 0.0
    %375 = vmatpush1.msra.mxu0 %v350
    %376 = vmatprep.subr.mxu0 0.0
    %377 = vmatpush1.msra.mxu0 %v351
    %378 = vmatprep.subr.mxu0 0.0
    %379 = vmatpush1.msra.mxu0 %v352
    %380 = vmatprep.subr.mxu0 0.0
    %381 = vmatpush1.msra.mxu0 %v353
    %382 = vmatprep.subr.mxu0 0.0
    %383 = vmatpush1.msra.mxu0 %v354
    %384 = vmatprep.subr.mxu0 0.0
    %385 = vmatpush1.msra.mxu0 0.0
    %386 = vmatprep.subr.mxu0 0.0
    %387 = vmatpush1.msra.mxu0 0.0
    %388 = vmatprep.subr.mxu0 0.0
    %389 = vmatpush1.msra.mxu0 0.0
    %390 = vmatprep.subr.mxu0 0.0
    %391 = vmatpush1.msra.mxu0 0.0
    %392 = vmatprep.subr.mxu0 0.0
    %393 = vmatpush1.msra.mxu0 0.0
    %394 = vmatprep.subr.mxu0 0.0
    %395 = vmatpush1.msra.mxu0 0.0
    %396 = vmatprep.subr.mxu0 0.0
    %397 = vmatpush1.msra.mxu0 0.0
    %398 = vmatprep.subr.mxu0 0.0
    %399 = vmatpush1.msra.mxu0 0.0
    %400 = vmatprep.subr.mxu0 0.0
    %401 = vmatpush1.msra.mxu0 0.0
    %402 = vmatprep.subr.mxu0 0.0
    %403 = vmatpush1.msra.mxu0 0.0
    %404 = vmatprep.subr.mxu0 0.0
    %405 = vmatpush1.msra.mxu0 0.0
    %406 = vmatprep.subr.mxu0 0.0
    %407 = vmatpush1.msra.mxu0 0.0
    %408 = vmatprep.subr.mxu0 0.0
    %409 = vmatpush1.msra.mxu0 0.0
    %410 = vmatprep.subr.mxu0 0.0
    %411 = vmatpush1.msra.mxu0 0.0
    %412 = vmatprep.subr.mxu0 0.0
    %413 = vmatpush1.msra.mxu0 0.0
    %414 = vmatprep.subr.mxu0 0.0
    %415 = vmatpush1.msra.mxu0 0.0
    %416 = vmatprep.subr.mxu0 0.0
    %417 = vmatpush1.msra.mxu0 0.0
    %418 = vmatprep.subr.mxu0 0.0
    %419 = vmatpush1.msra.mxu0 0.0
    %420 = vmatprep.subr.mxu0 0.0
    %421 = vmatpush1.msra.mxu0 0.0
    %422 = vmatprep.subr.mxu0 0.0
    %423 = vmatpush1.msra.mxu0 0.0
    %424 = vmatprep.subr.mxu0 0.0
    %425 = vmatpush1.msra.mxu0 0.0
    %426 = vmatprep.subr.mxu0 0.0
    %427 = vmatpush1.msra.mxu0 0.0
    %428 = vmatprep.subr.mxu0 0.0
    %429 = vmatpush1.msra.mxu0 0.0
    %430 = vmatprep.subr.mxu0 0.0
    %431 = vmatpush1.msra.mxu0 0.0
    %432 = vmatprep.mubr.f32.mxu0 0.0
    %433 = vmatmul.mubr.f32.gmra.mrb[0].mxu0 %v363
    %v434 = vpop.f32.mrb[0].mxu0
    %v435 = vadd.f32 %v360, %v434
    %v436 = vpop.f32.mrb[0].mxu0
    %437 = vmatprep.mubr.f32.mxu0 0.0
    %438 = vmatmul.mubr.f32.gmra.mrb[0].mxu0 %v366
    %v439 = vpop.f32.mrb[0].mxu0
    %v440 = vadd.f32 %v360, %v439
    %v441 = vpop.f32.mrb[0].mxu0
    %442 = vdwg.mxu0
    %v443 = vmax.f32 %v435, 0.0
    %v444 = vmax.f32 %v440, 0.0
    %445 = vst.msk [vmem:[#allocation2] sm:$0xff] %vm49, %v443
    %446 = vst.msk [vmem:[#allocation2 + $0x8] sm:$0xff] %vm49, %v444
    // Predicated region
    $region38: #{autoencoder_forward.1} parent=1 // pred_check
      _
    $region39: #{autoencoder_forward.1} parent=1 // pred_check_branch
      %448 = sbr.rel (0) target = $region41
    $region40: #{autoencoder_forward.1} parent=1 // pred_region
      %s450 = ssub.s32 256, 256
      %451 = vsyncadd [#allocation3], %s450
      %s452 = sshll.u32 [#allocation2], 4
      %s453 = int_to_ptr.vmem [resolvable:$true] %s452
      %458 = dma.vmem_to_hbm [thread:$0]  %s453, 256, %s9, [#allocation3], 128, 128, 8
    $region41: #{autoencoder_forward.1} parent=1 // pred_fallthru
      _
    // Predicated region
    $region42: #{autoencoder_forward.1} parent=1 // pred_check
      _
    $region43: #{autoencoder_forward.1} parent=1 // pred_check_branch
      %460 = sbr.rel (0) target = $region45
    $region44: #{autoencoder_forward.1} parent=1 // pred_region
      %s462 = ssub.s32 256, 256
      %463 = vsyncadd [#allocation5], %s462
      %s464 = sshll.u32 [#allocation4], 4
      %s465 = int_to_ptr.vmem [resolvable:$true] %s464
      %470 = dma.vmem_to_hbm [thread:$0]  %s465, 256, %s10, [#allocation5], 128, 128, 8
    $region45: #{autoencoder_forward.1} parent=1 // pred_fallthru
      _
    // Predicated region
    $region46: #{autoencoder_forward.1} parent=1 // pred_check
      _
    $region47: #{autoencoder_forward.1} parent=1 // pred_check_branch
      %472 = sbr.rel (0) target = $region49
    $region48: #{autoencoder_forward.1} parent=1 // pred_region
      %473 = dma.done [#allocation3], 256
    $region49: #{autoencoder_forward.1} parent=1 // pred_fallthru
      _
    // Predicated region
    $region50: #{autoencoder_forward.1} parent=1 // pred_check
      _
    $region51: #{autoencoder_forward.1} parent=1 // pred_check_branch
      %475 = sbr.rel (0) target = $region53
    $region52: #{autoencoder_forward.1} parent=1 // pred_region
      %476 = dma.done [#allocation5], 256
    $region53: #{autoencoder_forward.1} parent=1 // pred_fallthru
      _
    %477 = vsyncpa [#allocation3], 1
    %478 = vsyncpa [#allocation5], 1

</llo_original>
